<compile_context>
chip_gen: v6e
topology: v6e:2x2x1
jax: 0.10.0
libtpu: 0.0.40
codegen_flags: <defaults>
</compile_context>

<pallas_src>
import functools

import jax
import jax.numpy as jnp
from jax.experimental import pallas as pl
from jax.experimental.pallas import tpu as pltpu


def _round_up(x, m):
    return (x + m - 1) // m * m


def _conv1d_block_kernel(p_ref, w_ref, b_ref, o_ref):
    """Fused (conv-as-matmul) + folded-BN bias + ReLU for one lane tile.

    p_ref: (K*C_in_pad, LT)   im2col patches, bf16, lane-dense
    w_ref: (C_out_pad, K*C_in_pad)  BN-folded weight, tap-major columns, bf16
    b_ref: (C_out_pad, 1)     BN-folded bias, f32
    o_ref: (C_out_pad, LT)    output tile (LT % 128 == 0)
    """
    acc = jnp.dot(w_ref[...], p_ref[...],
                  preferred_element_type=jnp.float32)   # single MXU matmul
    y = acc + b_ref[...]                                # folded conv+BN bias
    y = jnp.maximum(y, 0.0)                             # ReLU; dropout = identity (eval)
    o_ref[...] = y.astype(o_ref.dtype)


def conv1d_block(x, weight, bias, gamma, beta, running_mean, running_var,
                 *, stride, eps=1e-5, compute_dtype=jnp.bfloat16):
    """x: (N, C_in, L) f32.  weight: (C_out, C_in, K).  Returns (N, C_out, L_out)."""
    n, c_in, length = x.shape
    c_out, _, k = weight.shape
    pad = k // 2
    l_p = length + 2 * pad
    l_out = (l_p - k) // stride + 1

    c_in_pad = _round_up(c_in, 8)
    c_out_pad = _round_up(c_out, 8)

    # ---- Fold BatchNorm (running stats) into the conv weight and bias. ----
    scale = gamma / jnp.sqrt(running_var + eps)
    w_folded = weight * scale[:, None, None]
    b_folded = (bias - running_mean) * scale + beta

    # Pad channels to sublane multiples; tap-major (C_out_pad, K*C_in_pad) weight.
    w_p = jnp.zeros((c_out_pad, c_in_pad, k), jnp.float32)
    w_p = w_p.at[:c_out, :c_in, :].set(w_folded.astype(jnp.float32))
    w2 = jnp.transpose(w_p, (0, 2, 1)).reshape(c_out_pad, k * c_in_pad)
    w2 = w2.astype(compute_dtype)
    b2 = jnp.zeros((c_out_pad, 1), jnp.float32).at[:c_out, 0].set(
        b_folded.astype(jnp.float32))

    # ---- im2col layout (pure gather/transpose, no arithmetic). ----
    # Per-batch segment of l_seg lanes (multiple of 128); batch collapsed onto lanes.
    l_seg = _round_up(l_out, 128)
    l_tot = max((l_seg - 1) * stride + k, l_p)
    x_p = jnp.zeros((n, c_in_pad, l_tot), x.dtype)
    x_p = x_p.at[:, :c_in, pad:pad + length].set(x)     # zero-padded "same" conv input

    taps = []
    for kk in range(k):
        sl = x_p[:, :, kk:kk + (l_seg - 1) * stride + 1:stride]   # (N, C_in_pad, l_seg)
        taps.append(jnp.transpose(sl, (1, 0, 2)))                 # (C_in_pad, N, l_seg)
    patches = jnp.stack(taps, axis=0).reshape(k * c_in_pad, n * l_seg)
    patches = patches.astype(compute_dtype)

    # ---- Lane tiling: widest multiple of l_seg under ~2048 lanes per step. ----
    # TODO(synk): for very long L, add an L-tile grid axis (halo via input block
    #             l_tile*stride + K - 1) instead of one full-length segment.
    bt = 1
    for cand in range(n, 0, -1):
        if n % cand == 0 and cand * l_seg <= 2048:
            bt = cand
            break
    lt = bt * l_seg
    grid = (n // bt,)

    out2 = pl.pallas_call(
        _conv1d_block_kernel,
        out_shape=jax.ShapeDtypeStruct((c_out_pad, n * l_seg), x.dtype),
        grid_spec=pltpu.PrefetchScalarGridSpec(
            num_scalar_prefetch=0,
            grid=grid,
            in_specs=[
                pl.BlockSpec((k * c_in_pad, lt), lambda i: (0, i)),
                pl.BlockSpec((c_out_pad, k * c_in_pad), lambda i: (0, 0)),
                pl.BlockSpec((c_out_pad, 1), lambda i: (0, 0)),
            ],
            out_specs=pl.BlockSpec((c_out_pad, lt), lambda i: (0, i)),
        ),
        compiler_params=pltpu.CompilerParams(
            dimension_semantics=("parallel",)),
    )(patches, w2, b2)

    # Un-layout: (C_out_pad, N*L_seg) -> (N, C_out, L_out).
    out = out2.reshape(c_out_pad, n, l_seg)
    out = jnp.transpose(out, (1, 0, 2))[:, :c_out, :l_out]
    return out


def _reference(x, weight, bias, gamma, beta, running_mean, running_var,
               *, stride, eps=1e-5):
    """Pure-JAX f32 reference mirroring the PyTorch eval-mode forward."""
    k = weight.shape[-1]
    y = jax.lax.conv_general_dilated(
        x, weight, window_strides=(stride,), padding=[(k // 2, k // 2)],
        dimension_numbers=("NCH", "OIH", "NCH"),
        precision=jax.lax.Precision.HIGHEST)
    y = y + bias[None, :, None]
    y = (y - running_mean[None, :, None]) / jnp.sqrt(running_var[None, :, None] + eps)
    y = y * gamma[None, :, None] + beta[None, :, None]
    return jnp.maximum(y, 0.0)


def _reference_quantized(x, weight, bias, gamma, beta, running_mean, running_var,
                         *, stride, eps=1e-5, compute_dtype=jnp.bfloat16):
    """Reference with the same bf16-quantized operands / f32 accumulation as the kernel."""
    k = weight.shape[-1]
    scale = gamma / jnp.sqrt(running_var + eps)
    w_folded = (weight * scale[:, None, None]).astype(compute_dtype).astype(jnp.float32)
    b_folded = (bias - running_mean) * scale + beta
    xq = x.astype(compute_dtype).astype(jnp.float32)
    y = jax.lax.conv_general_dilated(
        xq, w_folded, window_strides=(stride,), padding=[(k // 2, k // 2)],
        dimension_numbers=("NCH", "OIH", "NCH"),
        precision=jax.lax.Precision.HIGHEST)
    y = y + b_folded[None, :, None]
    return jnp.maximum(y, 0.0)


if __name__ == "__main__":
    # Conv1DBlock(in_channels=4, out_channels=8, kernel_size=3, stride=1, dropout_rate=0.5)
    N, C_IN, L = 2, 4, 16
    C_OUT, K, STRIDE = 8, 3, 1

    key = jax.random.PRNGKey(0)
    kx, kw, kb, kg, kbeta = jax.random.split(key, 5)

    x = jax.random.normal(kx, (N, C_IN, L), dtype=jnp.float32)
    weight = jax.random.normal(kw, (C_OUT, C_IN, K), dtype=jnp.float32) * 0.1
    bias = jax.random.normal(kb, (C_OUT,), dtype=jnp.float32) * 0.1
    gamma = 1.0 + 0.1 * jax.random.normal(kg, (C_OUT,), dtype=jnp.float32)
    beta = 0.1 * jax.random.normal(kbeta, (C_OUT,), dtype=jnp.float32)
    running_mean = jnp.zeros((C_OUT,), dtype=jnp.float32)
    running_var = jnp.ones((C_OUT,), dtype=jnp.float32)

    out = conv1d_block(x, weight, bias, gamma, beta, running_mean, running_var,
                       stride=STRIDE)
    out = jax.block_until_ready(out)

    # Exact-math check: same bf16 operands, f32 accumulation (order-only difference).
    ref_q = _reference_quantized(x, weight, bias, gamma, beta, running_mean,
                                 running_var, stride=STRIDE)
    assert out.shape == ref_q.shape, (out.shape, ref_q.shape)
    assert jnp.allclose(out, ref_q, atol=1e-4, rtol=1e-4), "mismatch vs quantized reference"

    # Semantic check vs the full-f32 PyTorch eval-mode forward (bf16 operand tolerance).
    ref = _reference(x, weight, bias, gamma, beta, running_mean, running_var,
                     stride=STRIDE)
    assert jnp.allclose(out, ref, atol=2e-2, rtol=2e-2), "mismatch vs f32 reference"

    print("KERNEL_OK")
</pallas_src>

<mosaic_0001>
module attributes {stable_mosaic.version = 11 : i64} {
  func.func @_conv1d_block_kernel(%arg0: i32, %arg1: memref<24x256xbf16, #tpu.memory_space<vmem>>, %arg2: memref<8x24xbf16, #tpu.memory_space<vmem>>, %arg3: memref<8x1xf32, #tpu.memory_space<vmem>>, %arg4: memref<8x256xf32, #tpu.memory_space<vmem>>) attributes {dimension_semantics = [#tpu.dimension_semantics<parallel>], iteration_bounds = array<i64: 1>, scalar_prefetch = 0 : i64, scratch_operands = 0 : i64, tpu.core_type = #tpu.core_type<tc>, window_params = [{transform_indices = @transform_0, window_bounds = array<i64: 24, 256>}, {pipeline_mode = #tpu.pipeline_mode<synchronous>, transform_indices = @transform_1, window_bounds = array<i64: 8, 24>}, {pipeline_mode = #tpu.pipeline_mode<synchronous>, transform_indices = @transform_2, window_bounds = array<i64: 8, 1>}, {transform_indices = @transform_3, window_bounds = array<i64: 8, 256>}]} {
    %c0 = arith.constant 0 : index
    %c0_0 = arith.constant 0 : index
    %0 = vector.load %arg2[%c0, %c0_0] : memref<8x24xbf16, #tpu.memory_space<vmem>>, vector<8x24xbf16>
    %c0_1 = arith.constant 0 : index
    %c0_2 = arith.constant 0 : index
    %1 = vector.load %arg1[%c0_1, %c0_2] : memref<24x256xbf16, #tpu.memory_space<vmem>>, vector<24x256xbf16>
    %cst = arith.constant dense<0.000000e+00> : vector<8x256xf32>
    %2 = tpu.matmul %0, %1, %cst {dimension_numbers = #tpu.dot_dimension_numbers<[1], [0], [0], [1], [0, 0, 1, 1], [], []>} : vector<8x24xbf16>, vector<24x256xbf16>, vector<8x256xf32> -> vector<8x256xf32>
    %c0_3 = arith.constant 0 : index
    %c0_4 = arith.constant 0 : index
    %3 = vector.load %arg3[%c0_3, %c0_4] : memref<8x1xf32, #tpu.memory_space<vmem>>, vector<8x1xf32>
    %4 = vector.broadcast %3 : vector<8x1xf32> to vector<8x256xf32>
    %5 = arith.addf %2, %4 : vector<8x256xf32>
    %cst_5 = arith.constant 0.000000e+00 : f32
    %6 = vector.broadcast %cst_5 : f32 to vector<8x256xf32>
    %7 = arith.maximumf %5, %6 : vector<8x256xf32>
    %c0_6 = arith.constant 0 : index
    %c0_7 = arith.constant 0 : index
    %8 = vector.load %arg4[%c0_6, %c0_7] : memref<8x256xf32, #tpu.memory_space<vmem>>, vector<8x256xf32>
    tpu.vector_store %arg4[%c0_6, %c0_7], %7 {strides = array<i32>} : memref<8x256xf32, #tpu.memory_space<vmem>>, vector<8x256xf32>,
    return
  }
  func.func @transform_0(%arg0: i32) -> (i32, i32) {
    %c0_i32 = arith.constant 0 : i32
    %c0_i32_0 = arith.constant 0 : i32
    return %c0_i32, %arg0 : i32, i32
  }
  func.func @transform_1(%arg0: i32) -> (i32, i32) {
    %c0_i32 = arith.constant 0 : i32
    %c0_i32_0 = arith.constant 0 : i32
    %c0_i32_1 = arith.constant 0 : i32
    return %c0_i32, %c0_i32_0 : i32, i32
  }
  func.func @transform_2(%arg0: i32) -> (i32, i32) {
    %c0_i32 = arith.constant 0 : i32
    %c0_i32_0 = arith.constant 0 : i32
    %c0_i32_1 = arith.constant 0 : i32
    return %c0_i32, %c0_i32_0 : i32, i32
  }
  func.func @transform_3(%arg0: i32) -> (i32, i32) {
    %c0_i32 = arith.constant 0 : i32
    %c0_i32_0 = arith.constant 0 : i32
    return %c0_i32, %arg0 : i32, i32
  }
}

</mosaic_0001>

<llo_original>
// kernel: tpu_custom_call.1
$region0: #{tpu_custom_call.1}
  #allocation0 [shape = 'u32[]', space=smem, size = 0x4, offset = 0x4, fixed_abs, tag = 'smem constant byte address 0x4 - core index']
  #allocation1 [shape = 'u32[144,128]{1,0:T(1,128)}', space=vmem, size = 0x12000, scoped, tag = 'internal scratch']
  %s0 = inlined_call_operand.hbm [shape: bf16[24,256], index: 0, kind: input, shape index: {}]
  %s1 = inlined_call_operand.vmem [shape: bf16[8,24], index: 1, kind: input, shape index: {}]
  %s2 = inlined_call_operand.vmem [shape: f32[8,1], index: 2, kind: input, shape index: {}]
  %s3 = inlined_call_operand.hbm [shape: f32[8,256], index: 3, kind: output, shape index: {}]
  %s4 = sld [smem:[#allocation0]]
  $region26: #{tpu_custom_call.1} parent=0
    _
  %s6 = ssub.s32 1, %s4
  %s7 = scalar_select 0, %s6, %s4
  $region1: #{tpu_custom_call.1} parent=0
    #allocation2 [shape = 'u8[12288]{0}', space=vmem, size = 0x3000, scoped, tag = 'input window, operand 0, single buffered']
    #allocation3 [shape = 's32[1]{0}', space=sflag, size = 0x4, scoped, tag = 'scoped memory for tpu_custom_call.1']
    #allocation4 [shape = 's32[1]{0}', space=sflag, size = 0x4, scoped, tag = 'scoped memory for tpu_custom_call.1']
    #allocation5 [shape = 'u8[8192]{0}', space=vmem, size = 0x2000, scoped, tag = 'output window, operand 0, single buffered']
    %8 = vsyncpa [#allocation3], 0
    %9 = vsyncpa [#allocation4], 0
    // Predicated region
    $region2: #{tpu_custom_call.1} parent=1 // pred_check
      _
    $region3: #{tpu_custom_call.1} parent=1 // pred_check_branch
      %11 = sbr.rel (0) target = $region5
    $region4: #{tpu_custom_call.1} parent=1 // pred_region
      %s13 = ssub.s32 384, 384
      %14 = vsyncadd [#allocation3], %s13
      %s15 = sshll.u32 [#allocation2], 4
      %s16 = int_to_ptr.vmem [resolvable:$true] %s15
      %21 = dma.hbm_to_vmem [thread:$0]  %s0, 384, %s16, [#allocation3], 128, 128, 8
    $region5: #{tpu_custom_call.1} parent=1 // pred_fallthru
      _
    // Predicated region
    $region6: #{tpu_custom_call.1} parent=1 // pred_check
      _
    $region7: #{tpu_custom_call.1} parent=1 // pred_check_branch
      %23 = sbr.rel (0) target = $region9
    $region8: #{tpu_custom_call.1} parent=1 // pred_region
      _
    $region9: #{tpu_custom_call.1} parent=1 // pred_fallthru
      _
    // Predicated region
    $region10: #{tpu_custom_call.1} parent=1 // pred_check
      _
    $region11: #{tpu_custom_call.1} parent=1 // pred_check_branch
      %25 = sbr.rel (0) target = $region13
    $region12: #{tpu_custom_call.1} parent=1 // pred_region
      _
    $region13: #{tpu_custom_call.1} parent=1 // pred_fallthru
      _
    // Predicated region
    $region14: #{tpu_custom_call.1} parent=1 // pred_check
      _
    $region15: #{tpu_custom_call.1} parent=1 // pred_check_branch
      %27 = sbr.rel (0) target = $region17
    $region16: #{tpu_custom_call.1} parent=1 // pred_region
      %28 = dma.done [#allocation3], 384
    $region17: #{tpu_custom_call.1} parent=1 // pred_fallthru
      _
    %v30 = vld [vmem:[%s1] sm:$0xf]
    %v31 = vld [vmem:[#allocation2] sm:$0xff]
    %v32 = vld [vmem:[#allocation2 + $0x8] sm:$0xff]
    %v33 = vld [vmem:[#allocation2 + $0x10] sm:$0xff]
    %v34 = vld [vmem:[%s2] sm:$0xff]
    %36 = vset.pattern.permute.xlu0 0
    %37 = vperm.xlu0 %36, %v34
    %v38 = vpop.permute.xlu0 %37
    %v43 = vunpack.c.l.b16 %v31
    %v44 = vunpack.c.h.b16 %v31
    %v45 = vunpack.c.l.b16 %v32
    %v46 = vunpack.c.h.b16 %v32
    %v47 = vunpack.c.l.b16 %v33
    %v48 = vunpack.c.h.b16 %v33
    %v49 = vpack.c.b16 %v45, %v43
    %v50 = vpack.c.b16 %v46, %v44
    %v51 = vpack.c.b16 %v47, %v47
    %v52 = vpack.c.b16 %v48, %v48
    %vm55 = vcmask 195584
    %v57 = vsel %vm55, %v30, 0
    %vm59 = vcmask 1043456
    %v61 = vsel %vm59, %v51, 0
    %v64 = vsel %vm59, %v52, 0
    %66 = vmatprep.subr.bf16.mxu0 0
    %67 = vmatpush1.bf16.msra.mxu0 0
    %68 = vmatprep.subr.bf16.mxu0 0
    %69 = vmatpush1.bf16.msra.mxu0 0
    %70 = vmatprep.subr.bf16.mxu0 0
    %71 = vmatpush1.bf16.msra.mxu0 0
    %72 = vmatprep.subr.bf16.mxu0 0
    %73 = vmatpush1.bf16.msra.mxu0 0
    %74 = vmatprep.subr.bf16.mxu0 0
    %75 = vmatpush1.bf16.msra.mxu0 0
    %76 = vmatprep.subr.bf16.mxu0 0
    %77 = vmatpush1.bf16.msra.mxu0 0
    %78 = vmatprep.subr.bf16.mxu0 %v64
    %79 = vmatpush1.bf16.msra.mxu0 %v61
    %80 = vmatprep.subr.bf16.mxu0 %v50
    %81 = vmatpush1.bf16.msra.mxu0 %v49
    %82 = vmatprep.subr.bf16.mxu0 0
    %83 = vmatpush2.bf16.msra.mxu0 0
    %84 = vmatprep.subr.bf16.mxu0 0
    %85 = vmatpush2.bf16.msra.mxu0 0
    %86 = vmatprep.subr.bf16.mxu0 0
    %87 = vmatpush2.bf16.msra.mxu0 0
    %88 = vmatprep.subr.bf16.mxu0 0
    %89 = vmatpush2.bf16.msra.mxu0 0
    %90 = vmatprep.subr.bf16.mxu0 0
    %91 = vmatpush2.bf16.msra.mxu0 0
    %92 = vmatprep.subr.bf16.mxu0 0
    %93 = vmatpush2.bf16.msra.mxu0 0
    %94 = vmatprep.subr.bf16.mxu0 0
    %95 = vmatpush2.bf16.msra.mxu0 0
    %96 = vmatprep.subr.bf16.mxu0 0
    %97 = vmatpush2.bf16.msra.mxu0 0
    %98 = vmatprep.mubr.bf16.mxu0 0
    %99 = vmatmul.mubr.bf16.gmra.mxu0 %v57
    %v100 = vpop.f32.mrf.mxu0
    %v101 = vadd.f32 %v38, %v100
    %v102 = vpop.f32.mrf.mxu0
    %v103 = vadd.f32 %v38, %v102
    %v104 = vpop.f32.mrf.mxu0
    %v105 = vpop.f32.mrf.mxu0
    %106 = vdwg.mxu0
    %v107 = vmax.f32 %v101, 0.0
    %v108 = vmax.f32 %v103, 0.0
    %109 = vst [vmem:[#allocation5] sm:$0xff] %v107
    %110 = vst [vmem:[#allocation5 + $0x8] sm:$0xff] %v108
    // Predicated region
    $region18: #{tpu_custom_call.1} parent=1 // pred_check
      _
    $region19: #{tpu_custom_call.1} parent=1 // pred_check_branch
      %112 = sbr.rel (0) target = $region21
    $region20: #{tpu_custom_call.1} parent=1 // pred_region
      %s114 = ssub.s32 256, 256
      %115 = vsyncadd [#allocation4], %s114
      %s117 = sshll.u32 [#allocation5], 4
      %s118 = int_to_ptr.vmem [resolvable:$true] %s117
      %120 = dma.vmem_to_hbm [thread:$0]  %s118, 256, %s3, [#allocation4]
    $region21: #{tpu_custom_call.1} parent=1 // pred_fallthru
      _
    // Predicated region
    $region22: #{tpu_custom_call.1} parent=1 // pred_check
      _
    $region23: #{tpu_custom_call.1} parent=1 // pred_check_branch
      %122 = sbr.rel (0) target = $region25
    $region24: #{tpu_custom_call.1} parent=1 // pred_region
      %123 = dma.done [#allocation4], 256
    $region25: #{tpu_custom_call.1} parent=1 // pred_fallthru
      _
    %124 = vsyncpa [#allocation3], 1
    %125 = vsyncpa [#allocation4], 1

</llo_original>
